<compile_context>
chip_gen: v6e
topology: v6e:2x2x1
jax: 0.10.0
libtpu: 0.0.40
codegen_flags: <defaults>
</compile_context>

<pallas_src>
import functools

import jax
import jax.numpy as jnp
from jax import lax
from jax.experimental import pallas as pl
from jax.experimental.pallas import tpu as pltpu


def _edge_kernel(thresh_ref, x_ref, halo_ref, out_ref, *, C, W, W_pad, TH, dilate):
    """One row tile.

    thresh_ref: SMEM (1,) f32
    x_ref:      VMEM (C, TH, W_pad)        -- this tile's image rows
    halo_ref:   VMEM (1, C, 2*halo, W_pad) -- reflect-resolved top/bottom halo rows
    out_ref:    VMEM (TH, W_pad)
    """
    r = dilate // 2
    halo = r + 1
    rows = TH + 2 * r  # edge-map rows computed here (incl. dilation halo)

    thresh = thresh_ref[0]

    col = lax.broadcasted_iota(jnp.int32, (rows, W_pad), 1)
    is_col0 = col == 0
    is_colW1 = col == (W - 1)

    def neighbors(a):
        """(left, right) neighbors along the lane axis with 1-px reflection.

        left[:, j]  = a[:, j-1]   (j==0   -> a[:, 1],   the reflected column)
        right[:, j] = a[:, j+1]   (j==W-1 -> a[:, W-2], the reflected column)
        Static-shift jnp.roll lowers to a lane slice+concat in Mosaic.
        """
        lr = jnp.roll(a, 1, axis=1)    # lr[:, j] = a[:, j-1]  (wrap)
        rr = jnp.roll(a, -1, axis=1)   # rr[:, j] = a[:, j+1]  (wrap)
        left = jnp.where(is_col0, rr, lr)      # rr[:, 0]   == a[:, 1]
        right = jnp.where(is_colW1, lr, rr)    # lr[:, W-1] == a[:, W-2]
        return left, right

    acc = jnp.zeros((rows, W_pad), jnp.float32)
    for c in range(C):
        # Stitch [top halo | tile rows | bottom halo] -> (TH + 2*halo, W_pad)
        x = jnp.concatenate(
            [halo_ref[0, c, 0:halo, :], x_ref[c], halo_ref[0, c, halo:2 * halo, :]],
            axis=0)
        # Separable Sobel: vertical pass (sublane slices) ...
        sm = x[:-2] + 2.0 * x[1:-1] + x[2:]   # (rows, W_pad)  smoothed rows
        df = x[2:] - x[:-2]                   # (rows, W_pad)  row difference
        # ... then horizontal pass (lane rolls, reflect at true image columns).
        sm_l, sm_r = neighbors(sm)
        df_l, df_r = neighbors(df)
        gh = sm_r - sm_l                      # horizontal Sobel
        gv = df_l + 2.0 * df + df_r           # vertical Sobel
        acc = acc + jnp.maximum(jnp.abs(gh), jnp.abs(gv))

    edge = (acc * (1.0 / C) > thresh).astype(jnp.float32)
    if W_pad != W:
        # Kill lane-padding columns so they can't dilate into real pixels.
        edge = jnp.where(col < W, edge, 0.0)

    # Separable stride-1 max-pool (dilation).  Zero "padding" is equivalent to
    # PyTorch's implicit -inf padding because edge values are in {0, 1} and
    # every window contains >= 1 real pixel.
    hmax = edge
    for k in range(1, r + 1):
        rs = jnp.roll(edge, -k, axis=1)   # rs[:, j] = edge[:, j + k]  (wrap)
        ls = jnp.roll(edge, k, axis=1)    # ls[:, j] = edge[:, j - k]  (wrap)
        if W_pad - W < k:                 # roll wrap-around could reach real columns
            rs = jnp.where(col + k < W, rs, 0.0)
            ls = jnp.where(col >= k, ls, 0.0)
        hmax = jnp.maximum(hmax, jnp.maximum(rs, ls))

    dil = hmax[r:r + TH]
    for k in range(1, r + 1):
        dil = jnp.maximum(dil, jnp.maximum(hmax[r - k:r - k + TH],
                                           hmax[r + k:r + k + TH]))
    out_ref[...] = dil


def _round_up(x, m):
    return (x + m - 1) // m * m


def _pick_tile_rows(H, C, W_pad):
    """Largest row tile (multiple of 8, dividing H) whose input slab is <= ~6 MiB."""
    budget = 6 << 20
    cands = [t for t in (512, 256, 128, 64, 32, 16, 8) if t <= H and H % t == 0]
    for t in cands:
        if 4 * C * t * W_pad <= budget:
            return t
    return cands[-1] if cands else H


def edge_detector(rgb, param_edge_thresh, param_edge_dilate, *, tile_rows=None):
    """rgb: [1, C, H, W] float32 (NCHW). Returns [1, 1, H, W] float32.

    param_edge_dilate must be a static (Python) odd int (fixes the max-pool
    window at trace time, like kernel_size in F.max_pool2d).
    """
    assert rgb.ndim == 4 and rgb.shape[0] == 1
    _, C, H, W = rgb.shape
    dilate = int(param_edge_dilate)
    assert dilate >= 1 and dilate % 2 == 1
    r = dilate // 2
    halo = r + 1                       # conv (1 row) + dilation (r rows) halo
    assert H >= halo + 1 and W >= 2, "image too small for this tiled kernel"

    x = rgb[0].astype(jnp.float32)     # (C, H, W)
    W_pad = max(128, _round_up(W, 128))  # lane-dense last dim
    if W_pad != W:
        x = jnp.pad(x, ((0, 0), (0, 0), (0, W_pad - W)))

    TH = int(tile_rows) if tile_rows is not None else _pick_tile_rows(H, C, W_pad)
    assert H % TH == 0 and (TH % 8 == 0 or TH == H), "tile_rows must divide H (mult of 8)"
    tiles = H // TH

    # Tiny per-tile halo rows (reflect indices resolved here).  This re-reads
    # only 2*halo rows per tile instead of writing a full reflection-padded
    # copy of the image through HBM.
    starts = jnp.arange(tiles, dtype=jnp.int32) * TH
    k = jnp.arange(halo, dtype=jnp.int32)
    top = starts[:, None] - halo + k[None, :]
    bot = starts[:, None] + TH + k[None, :]
    idx = jnp.concatenate([top, bot], axis=1)              # (tiles, 2*halo)
    idx = jnp.where(idx < 0, -idx, idx)                    # reflect (no edge repeat)
    idx = jnp.where(idx >= H, 2 * (H - 1) - idx, idx)
    halos = jnp.transpose(x[:, idx, :], (1, 0, 2, 3))      # (tiles, C, 2*halo, W_pad)

    thresh = jnp.asarray([param_edge_thresh], dtype=jnp.float32)

    kernel = functools.partial(_edge_kernel, C=C, W=W, W_pad=W_pad, TH=TH,
                               dilate=dilate)

    rows = TH + 2 * r
    vmem_est = 4 * W_pad * (2 * C * (TH + 2 * halo) + 2 * TH + 10 * rows)
    vmem_limit = int(min(64 << 20, max(32 << 20, 2 * vmem_est)))

    cost = pl.CostEstimate(
        flops=int(30 * C * H * W_pad + 12 * H * W_pad * (r + 1)),
        transcendentals=0,
        bytes_accessed=int(4 * W_pad * (C * H + H + tiles * C * 2 * halo)),
    )

    out = pl.pallas_call(
        kernel,
        out_shape=jax.ShapeDtypeStruct((H, W_pad), jnp.float32),
        grid=(tiles,),
        in_specs=[
            pl.BlockSpec(memory_space=pltpu.MemorySpace.SMEM),              # threshold
            pl.BlockSpec((C, TH, W_pad), lambda i: (0, i, 0)),              # row slab
            pl.BlockSpec((1, C, 2 * halo, W_pad), lambda i: (i, 0, 0, 0)),  # halo rows
        ],
        out_specs=pl.BlockSpec((TH, W_pad), lambda i: (i, 0)),
        compiler_params=pltpu.CompilerParams(
            dimension_semantics=("parallel",),
            vmem_limit_bytes=vmem_limit),
        cost_estimate=cost,
    )(thresh, x, halos)

    return out[:, :W][None, None]      # (1, 1, H, W)


def _reference(rgb, thresh, dilate):
    """Pure-JAX reference matching the PyTorch forward (NCHW)."""
    sob_h = jnp.array([[-1, 0, 1], [-2, 0, 2], [-1, 0, 1]], jnp.float32)
    sob_v = jnp.array([[-1, -2, -1], [0, 0, 0], [1, 2, 1]], jnp.float32)
    x = jnp.pad(rgb, ((0, 0), (0, 0), (1, 1), (1, 1)), mode="reflect")
    kh = jnp.tile(sob_h.reshape(1, 1, 3, 3), (3, 1, 1, 1))
    kv = jnp.tile(sob_v.reshape(1, 1, 3, 3), (3, 1, 1, 1))
    dn = jax.lax.conv_dimension_numbers(x.shape, kh.shape, ("NCHW", "OIHW", "NCHW"))
    eh = jax.lax.conv_general_dilated(x, kh, (1, 1), "VALID",
                                      dimension_numbers=dn, feature_group_count=3)
    ev = jax.lax.conv_general_dilated(x, kv, (1, 1), "VALID",
                                      dimension_numbers=dn, feature_group_count=3)
    edge = jnp.maximum(jnp.abs(eh), jnp.abs(ev))
    edge = jnp.mean(edge, axis=1, keepdims=True)
    edge = (edge > thresh).astype(jnp.float32)
    rr = dilate // 2
    edge = jax.lax.reduce_window(edge, -jnp.inf, jax.lax.max,
                                 (1, 1, dilate, dilate), (1, 1, 1, 1),
                                 [(0, 0), (0, 0), (rr, rr), (rr, rr)])
    return edge


if __name__ == "__main__":
    key = jax.random.PRNGKey(0)
    k1, k2 = jax.random.split(key)

    # Integer-valued inputs + off-grid thresholds keep the strict '>' compare
    # far from float rounding, so kernel and reference agree bit-exactly.

    # Test 1: W=32 (lane-padded to 128), dilate=3, 4 row tiles of 8 rows
    #         (exercises reflect boundaries and interior tile seams).
    H1, W1 = 32, 32
    rgb1 = jnp.floor(jax.random.uniform(k1, (1, 3, H1, W1), dtype=jnp.float32) * 8.0)
    run1 = jax.jit(functools.partial(edge_detector, param_edge_dilate=3, tile_rows=8))
    out1 = jax.block_until_ready(run1(rgb1, 7.17))
    ref1 = _reference(rgb1, 7.17, 3)
    assert out1.shape == (1, 1, H1, W1), out1.shape
    assert jnp.allclose(out1, ref1), "test1 mismatch vs pure-JAX reference"

    # Test 2: lane-aligned W=128 (no padding), dilate=5, 2 row tiles of 16 rows
    #         (exercises the wrap-around guards and r=2 halo path).
    H2, W2 = 32, 128
    rgb2 = jnp.floor(jax.random.uniform(k2, (1, 3, H2, W2), dtype=jnp.float32) * 8.0)
    run2 = jax.jit(functools.partial(edge_detector, param_edge_dilate=5, tile_rows=16))
    out2 = jax.block_until_ready(run2(rgb2, 6.5))
    ref2 = _reference(rgb2, 6.5, 5)
    assert out2.shape == (1, 1, H2, W2), out2.shape
    assert jnp.allclose(out2, ref2), "test2 mismatch vs pure-JAX reference"

    print("KERNEL_OK")
</pallas_src>

<mosaic_0001>
module attributes {stable_mosaic.version = 11 : i64} {
  func.func @_edge_kernel(%arg0: i32, %arg1: memref<1xf32, #tpu.memory_space<smem>>, %arg2: memref<3x8x128xf32, #tpu.memory_space<vmem>>, %arg3: memref<1x3x4x128xf32, #tpu.memory_space<vmem>>, %arg4: memref<8x128xf32, #tpu.memory_space<vmem>>) attributes {dimension_semantics = [#tpu.dimension_semantics<parallel>], iteration_bounds = array<i64: 4>, scalar_prefetch = 0 : i64, scratch_operands = 0 : i64, tpu.core_type = #tpu.core_type<tc>, window_params = [{transform_indices = @transform_0, window_bounds = array<i64: 1>}, {transform_indices = @transform_1, window_bounds = array<i64: 3, 8, 128>}, {transform_indices = @transform_2, window_bounds = array<i64: 1, 3, 4, 128>}, {transform_indices = @transform_3, window_bounds = array<i64: 8, 128>}]} {
    %c0 = arith.constant 0 : index
    %0 = memref.load %arg1[%c0] : memref<1xf32, #tpu.memory_space<smem>>
    %1 = tpu.iota {dimensions = array<i32: 1>} : vector<10x128xi32>
    %c0_i32 = arith.constant 0 : i32
    %2 = vector.broadcast %c0_i32 : i32 to vector<10x128xi32>
    %3 = arith.cmpi eq, %1, %2 : vector<10x128xi32>
    %c31_i32 = arith.constant 31 : i32
    %4 = vector.broadcast %c31_i32 : i32 to vector<10x128xi32>
    %5 = arith.cmpi eq, %1, %4 : vector<10x128xi32>
    %cst = arith.constant 0.000000e+00 : f32
    %6 = vector.broadcast %cst : f32 to vector<10x128xf32>
    %c0_0 = arith.constant 0 : index
    %c0_1 = arith.constant 0 : index
    %c0_2 = arith.constant 0 : index
    %c0_3 = arith.constant 0 : index
    %7 = vector.load %arg3[%c0_0, %c0_1, %c0_2, %c0_3] : memref<1x3x4x128xf32, #tpu.memory_space<vmem>>, vector<1x1x2x128xf32>
    %8 = vector.shape_cast %7 : vector<1x1x2x128xf32> to vector<2x128xf32>
    %c0_4 = arith.constant 0 : index
    %c0_5 = arith.constant 0 : index
    %c0_6 = arith.constant 0 : index
    %9 = vector.load %arg2[%c0_4, %c0_5, %c0_6] : memref<3x8x128xf32, #tpu.memory_space<vmem>>, vector<1x8x128xf32>
    %10 = vector.shape_cast %9 : vector<1x8x128xf32> to vector<8x128xf32>
    %c0_7 = arith.constant 0 : index
    %c0_8 = arith.constant 0 : index
    %c2 = arith.constant 2 : index
    %c0_9 = arith.constant 0 : index
    %11 = vector.load %arg3[%c0_7, %c0_8, %c2, %c0_9] : memref<1x3x4x128xf32, #tpu.memory_space<vmem>>, vector<1x1x2x128xf32>
    %12 = vector.shape_cast %11 : vector<1x1x2x128xf32> to vector<2x128xf32>
    %13 = tpu.concatenate %8, %10, %12 in 0 : vector<2x128xf32>, vector<8x128xf32>, vector<2x128xf32> -> vector<12x128xf32>
    %14 = vector.extract_strided_slice %13 {offsets = [0, 0], sizes = [10, 128], strides = [1, 1]} : vector<12x128xf32> to vector<10x128xf32>
    %15 = vector.extract_strided_slice %13 {offsets = [1, 0], sizes = [10, 128], strides = [1, 1]} : vector<12x128xf32> to vector<10x128xf32>
    %cst_10 = arith.constant 2.000000e+00 : f32
    %16 = vector.broadcast %cst_10 : f32 to vector<10x128xf32>
    %17 = arith.mulf %16, %15 : vector<10x128xf32>
    %18 = arith.addf %14, %17 : vector<10x128xf32>
    %19 = vector.extract_strided_slice %13 {offsets = [2, 0], sizes = [10, 128], strides = [1, 1]} : vector<12x128xf32> to vector<10x128xf32>
    %20 = arith.addf %18, %19 : vector<10x128xf32>
    %21 = vector.extract_strided_slice %13 {offsets = [2, 0], sizes = [10, 128], strides = [1, 1]} : vector<12x128xf32> to vector<10x128xf32>
    %22 = vector.extract_strided_slice %13 {offsets = [0, 0], sizes = [10, 128], strides = [1, 1]} : vector<12x128xf32> to vector<10x128xf32>
    %23 = arith.subf %21, %22 : vector<10x128xf32>
    %24 = vector.extract_strided_slice %20 {offsets = [0, 127], sizes = [10, 1], strides = [1, 1]} : vector<10x128xf32> to vector<10x1xf32>
    %25 = vector.extract_strided_slice %20 {offsets = [0, 0], sizes = [10, 127], strides = [1, 1]} : vector<10x128xf32> to vector<10x127xf32>
    %26 = tpu.concatenate %24, %25 in 1 : vector<10x1xf32>, vector<10x127xf32> -> vector<10x128xf32>
    %27 = vector.extract_strided_slice %20 {offsets = [0, 1], sizes = [10, 127], strides = [1, 1]} : vector<10x128xf32> to vector<10x127xf32>
    %28 = vector.extract_strided_slice %20 {offsets = [0, 0], sizes = [10, 1], strides = [1, 1]} : vector<10x128xf32> to vector<10x1xf32>
    %29 = tpu.concatenate %27, %28 in 1 : vector<10x127xf32>, vector<10x1xf32> -> vector<10x128xf32>
    %30 = arith.select %3, %29, %26 : vector<10x128xi1>, vector<10x128xf32>
    %31 = arith.select %5, %26, %29 : vector<10x128xi1>, vector<10x128xf32>
    %32 = vector.extract_strided_slice %23 {offsets = [0, 127], sizes = [10, 1], strides = [1, 1]} : vector<10x128xf32> to vector<10x1xf32>
    %33 = vector.extract_strided_slice %23 {offsets = [0, 0], sizes = [10, 127], strides = [1, 1]} : vector<10x128xf32> to vector<10x127xf32>
    %34 = tpu.concatenate %32, %33 in 1 : vector<10x1xf32>, vector<10x127xf32> -> vector<10x128xf32>
    %35 = vector.extract_strided_slice %23 {offsets = [0, 1], sizes = [10, 127], strides = [1, 1]} : vector<10x128xf32> to vector<10x127xf32>
    %36 = vector.extract_strided_slice %23 {offsets = [0, 0], sizes = [10, 1], strides = [1, 1]} : vector<10x128xf32> to vector<10x1xf32>
    %37 = tpu.concatenate %35, %36 in 1 : vector<10x127xf32>, vector<10x1xf32> -> vector<10x128xf32>
    %38 = arith.select %3, %37, %34 : vector<10x128xi1>, vector<10x128xf32>
    %39 = arith.select %5, %34, %37 : vector<10x128xi1>, vector<10x128xf32>
    %40 = arith.subf %31, %30 : vector<10x128xf32>
    %cst_11 = arith.constant 2.000000e+00 : f32
    %41 = vector.broadcast %cst_11 : f32 to vector<10x128xf32>
    %42 = arith.mulf %41, %23 : vector<10x128xf32>
    %43 = arith.addf %38, %42 : vector<10x128xf32>
    %44 = arith.addf %43, %39 : vector<10x128xf32>
    %45 = math.absf %40 : vector<10x128xf32>
    %46 = math.absf %44 : vector<10x128xf32>
    %47 = arith.maximumf %45, %46 : vector<10x128xf32>
    %48 = arith.addf %6, %47 : vector<10x128xf32>
    %c0_12 = arith.constant 0 : index
    %c1 = arith.constant 1 : index
    %c0_13 = arith.constant 0 : index
    %c0_14 = arith.constant 0 : index
    %49 = vector.load %arg3[%c0_12, %c1, %c0_13, %c0_14] : memref<1x3x4x128xf32, #tpu.memory_space<vmem>>, vector<1x1x2x128xf32>
    %50 = vector.shape_cast %49 : vector<1x1x2x128xf32> to vector<2x128xf32>
    %c1_15 = arith.constant 1 : index
    %c0_16 = arith.constant 0 : index
    %c0_17 = arith.constant 0 : index
    %51 = vector.load %arg2[%c1_15, %c0_16, %c0_17] : memref<3x8x128xf32, #tpu.memory_space<vmem>>, vector<1x8x128xf32>
    %52 = vector.shape_cast %51 : vector<1x8x128xf32> to vector<8x128xf32>
    %c0_18 = arith.constant 0 : index
    %c1_19 = arith.constant 1 : index
    %c2_20 = arith.constant 2 : index
    %c0_21 = arith.constant 0 : index
    %53 = vector.load %arg3[%c0_18, %c1_19, %c2_20, %c0_21] : memref<1x3x4x128xf32, #tpu.memory_space<vmem>>, vector<1x1x2x128xf32>
    %54 = vector.shape_cast %53 : vector<1x1x2x128xf32> to vector<2x128xf32>
    %55 = tpu.concatenate %50, %52, %54 in 0 : vector<2x128xf32>, vector<8x128xf32>, vector<2x128xf32> -> vector<12x128xf32>
    %56 = vector.extract_strided_slice %55 {offsets = [0, 0], sizes = [10, 128], strides = [1, 1]} : vector<12x128xf32> to vector<10x128xf32>
    %57 = vector.extract_strided_slice %55 {offsets = [1, 0], sizes = [10, 128], strides = [1, 1]} : vector<12x128xf32> to vector<10x128xf32>
    %cst_22 = arith.constant 2.000000e+00 : f32
    %58 = vector.broadcast %cst_22 : f32 to vector<10x128xf32>
    %59 = arith.mulf %58, %57 : vector<10x128xf32>
    %60 = arith.addf %56, %59 : vector<10x128xf32>
    %61 = vector.extract_strided_slice %55 {offsets = [2, 0], sizes = [10, 128], strides = [1, 1]} : vector<12x128xf32> to vector<10x128xf32>
    %62 = arith.addf %60, %61 : vector<10x128xf32>
    %63 = vector.extract_strided_slice %55 {offsets = [2, 0], sizes = [10, 128], strides = [1, 1]} : vector<12x128xf32> to vector<10x128xf32>
    %64 = vector.extract_strided_slice %55 {offsets = [0, 0], sizes = [10, 128], strides = [1, 1]} : vector<12x128xf32> to vector<10x128xf32>
    %65 = arith.subf %63, %64 : vector<10x128xf32>
    %66 = vector.extract_strided_slice %62 {offsets = [0, 127], sizes = [10, 1], strides = [1, 1]} : vector<10x128xf32> to vector<10x1xf32>
    %67 = vector.extract_strided_slice %62 {offsets = [0, 0], sizes = [10, 127], strides = [1, 1]} : vector<10x128xf32> to vector<10x127xf32>
    %68 = tpu.concatenate %66, %67 in 1 : vector<10x1xf32>, vector<10x127xf32> -> vector<10x128xf32>
    %69 = vector.extract_strided_slice %62 {offsets = [0, 1], sizes = [10, 127], strides = [1, 1]} : vector<10x128xf32> to vector<10x127xf32>
    %70 = vector.extract_strided_slice %62 {offsets = [0, 0], sizes = [10, 1], strides = [1, 1]} : vector<10x128xf32> to vector<10x1xf32>
    %71 = tpu.concatenate %69, %70 in 1 : vector<10x127xf32>, vector<10x1xf32> -> vector<10x128xf32>
    %72 = arith.select %3, %71, %68 : vector<10x128xi1>, vector<10x128xf32>
    %73 = arith.select %5, %68, %71 : vector<10x128xi1>, vector<10x128xf32>
    %74 = vector.extract_strided_slice %65 {offsets = [0, 127], sizes = [10, 1], strides = [1, 1]} : vector<10x128xf32> to vector<10x1xf32>
    %75 = vector.extract_strided_slice %65 {offsets = [0, 0], sizes = [10, 127], strides = [1, 1]} : vector<10x128xf32> to vector<10x127xf32>
    %76 = tpu.concatenate %74, %75 in 1 : vector<10x1xf32>, vector<10x127xf32> -> vector<10x128xf32>
    %77 = vector.extract_strided_slice %65 {offsets = [0, 1], sizes = [10, 127], strides = [1, 1]} : vector<10x128xf32> to vector<10x127xf32>
    %78 = vector.extract_strided_slice %65 {offsets = [0, 0], sizes = [10, 1], strides = [1, 1]} : vector<10x128xf32> to vector<10x1xf32>
    %79 = tpu.concatenate %77, %78 in 1 : vector<10x127xf32>, vector<10x1xf32> -> vector<10x128xf32>
    %80 = arith.select %3, %79, %76 : vector<10x128xi1>, vector<10x128xf32>
    %81 = arith.select %5, %76, %79 : vector<10x128xi1>, vector<10x128xf32>
    %82 = arith.subf %73, %72 : vector<10x128xf32>
    %cst_23 = arith.constant 2.000000e+00 : f32
    %83 = vector.broadcast %cst_23 : f32 to vector<10x128xf32>
    %84 = arith.mulf %83, %65 : vector<10x128xf32>
    %85 = arith.addf %80, %84 : vector<10x128xf32>
    %86 = arith.addf %85, %81 : vector<10x128xf32>
    %87 = math.absf %82 : vector<10x128xf32>
    %88 = math.absf %86 : vector<10x128xf32>
    %89 = arith.maximumf %87, %88 : vector<10x128xf32>
    %90 = arith.addf %48, %89 : vector<10x128xf32>
    %c0_24 = arith.constant 0 : index
    %c2_25 = arith.constant 2 : index
    %c0_26 = arith.constant 0 : index
    %c0_27 = arith.constant 0 : index
    %91 = vector.load %arg3[%c0_24, %c2_25, %c0_26, %c0_27] : memref<1x3x4x128xf32, #tpu.memory_space<vmem>>, vector<1x1x2x128xf32>
    %92 = vector.shape_cast %91 : vector<1x1x2x128xf32> to vector<2x128xf32>
    %c2_28 = arith.constant 2 : index
    %c0_29 = arith.constant 0 : index
    %c0_30 = arith.constant 0 : index
    %93 = vector.load %arg2[%c2_28, %c0_29, %c0_30] : memref<3x8x128xf32, #tpu.memory_space<vmem>>, vector<1x8x128xf32>
    %94 = vector.shape_cast %93 : vector<1x8x128xf32> to vector<8x128xf32>
    %c0_31 = arith.constant 0 : index
    %c2_32 = arith.constant 2 : index
    %c2_33 = arith.constant 2 : index
    %c0_34 = arith.constant 0 : index
    %95 = vector.load %arg3[%c0_31, %c2_32, %c2_33, %c0_34] : memref<1x3x4x128xf32, #tpu.memory_space<vmem>>, vector<1x1x2x128xf32>
    %96 = vector.shape_cast %95 : vector<1x1x2x128xf32> to vector<2x128xf32>
    %97 = tpu.concatenate %92, %94, %96 in 0 : vector<2x128xf32>, vector<8x128xf32>, vector<2x128xf32> -> vector<12x128xf32>
    %98 = vector.extract_strided_slice %97 {offsets = [0, 0], sizes = [10, 128], strides = [1, 1]} : vector<12x128xf32> to vector<10x128xf32>
    %99 = vector.extract_strided_slice %97 {offsets = [1, 0], sizes = [10, 128], strides = [1, 1]} : vector<12x128xf32> to vector<10x128xf32>
    %cst_35 = arith.constant 2.000000e+00 : f32
    %100 = vector.broadcast %cst_35 : f32 to vector<10x128xf32>
    %101 = arith.mulf %100, %99 : vector<10x128xf32>
    %102 = arith.addf %98, %101 : vector<10x128xf32>
    %103 = vector.extract_strided_slice %97 {offsets = [2, 0], sizes = [10, 128], strides = [1, 1]} : vector<12x128xf32> to vector<10x128xf32>
    %104 = arith.addf %102, %103 : vector<10x128xf32>
    %105 = vector.extract_strided_slice %97 {offsets = [2, 0], sizes = [10, 128], strides = [1, 1]} : vector<12x128xf32> to vector<10x128xf32>
    %106 = vector.extract_strided_slice %97 {offsets = [0, 0], sizes = [10, 128], strides = [1, 1]} : vector<12x128xf32> to vector<10x128xf32>
    %107 = arith.subf %105, %106 : vector<10x128xf32>
    %108 = vector.extract_strided_slice %104 {offsets = [0, 127], sizes = [10, 1], strides = [1, 1]} : vector<10x128xf32> to vector<10x1xf32>
    %109 = vector.extract_strided_slice %104 {offsets = [0, 0], sizes = [10, 127], strides = [1, 1]} : vector<10x128xf32> to vector<10x127xf32>
    %110 = tpu.concatenate %108, %109 in 1 : vector<10x1xf32>, vector<10x127xf32> -> vector<10x128xf32>
    %111 = vector.extract_strided_slice %104 {offsets = [0, 1], sizes = [10, 127], strides = [1, 1]} : vector<10x128xf32> to vector<10x127xf32>
    %112 = vector.extract_strided_slice %104 {offsets = [0, 0], sizes = [10, 1], strides = [1, 1]} : vector<10x128xf32> to vector<10x1xf32>
    %113 = tpu.concatenate %111, %112 in 1 : vector<10x127xf32>, vector<10x1xf32> -> vector<10x128xf32>
    %114 = arith.select %3, %113, %110 : vector<10x128xi1>, vector<10x128xf32>
    %115 = arith.select %5, %110, %113 : vector<10x128xi1>, vector<10x128xf32>
    %116 = vector.extract_strided_slice %107 {offsets = [0, 127], sizes = [10, 1], strides = [1, 1]} : vector<10x128xf32> to vector<10x1xf32>
    %117 = vector.extract_strided_slice %107 {offsets = [0, 0], sizes = [10, 127], strides = [1, 1]} : vector<10x128xf32> to vector<10x127xf32>
    %118 = tpu.concatenate %116, %117 in 1 : vector<10x1xf32>, vector<10x127xf32> -> vector<10x128xf32>
    %119 = vector.extract_strided_slice %107 {offsets = [0, 1], sizes = [10, 127], strides = [1, 1]} : vector<10x128xf32> to vector<10x127xf32>
    %120 = vector.extract_strided_slice %107 {offsets = [0, 0], sizes = [10, 1], strides = [1, 1]} : vector<10x128xf32> to vector<10x1xf32>
    %121 = tpu.concatenate %119, %120 in 1 : vector<10x127xf32>, vector<10x1xf32> -> vector<10x128xf32>
    %122 = arith.select %3, %121, %118 : vector<10x128xi1>, vector<10x128xf32>
    %123 = arith.select %5, %118, %121 : vector<10x128xi1>, vector<10x128xf32>
    %124 = arith.subf %115, %114 : vector<10x128xf32>
    %cst_36 = arith.constant 2.000000e+00 : f32
    %125 = vector.broadcast %cst_36 : f32 to vector<10x128xf32>
    %126 = arith.mulf %125, %107 : vector<10x128xf32>
    %127 = arith.addf %122, %126 : vector<10x128xf32>
    %128 = arith.addf %127, %123 : vector<10x128xf32>
    %129 = math.absf %124 : vector<10x128xf32>
    %130 = math.absf %128 : vector<10x128xf32>
    %131 = arith.maximumf %129, %130 : vector<10x128xf32>
    %132 = arith.addf %90, %131 : vector<10x128xf32>
    %cst_37 = arith.constant 0.333333343 : f32
    %133 = vector.broadcast %cst_37 : f32 to vector<10x128xf32>
    %134 = arith.mulf %132, %133 : vector<10x128xf32>
    %135 = vector.broadcast %0 : f32 to vector<10x128xf32>
    %136 = arith.cmpf ogt, %134, %135 : vector<10x128xf32>
    %137 = arith.extui %136 : vector<10x128xi1> to vector<10x128xi32>
    %138 = arith.sitofp %137 : vector<10x128xi32> to vector<10x128xf32>
    %c32_i32 = arith.constant 32 : i32
    %139 = vector.broadcast %c32_i32 : i32 to vector<10x128xi32>
    %140 = arith.cmpi slt, %1, %139 : vector<10x128xi32>
    %cst_38 = arith.constant 0.000000e+00 : f32
    %141 = vector.broadcast %cst_38 : f32 to vector<10x128xf32>
    %142 = arith.select %140, %138, %141 : vector<10x128xi1>, vector<10x128xf32>
    %143 = vector.extract_strided_slice %142 {offsets = [0, 1], sizes = [10, 127], strides = [1, 1]} : vector<10x128xf32> to vector<10x127xf32>
    %144 = vector.extract_strided_slice %142 {offsets = [0, 0], sizes = [10, 1], strides = [1, 1]} : vector<10x128xf32> to vector<10x1xf32>
    %145 = tpu.concatenate %143, %144 in 1 : vector<10x127xf32>, vector<10x1xf32> -> vector<10x128xf32>
    %146 = vector.extract_strided_slice %142 {offsets = [0, 127], sizes = [10, 1], strides = [1, 1]} : vector<10x128xf32> to vector<10x1xf32>
    %147 = vector.extract_strided_slice %142 {offsets = [0, 0], sizes = [10, 127], strides = [1, 1]} : vector<10x128xf32> to vector<10x127xf32>
    %148 = tpu.concatenate %146, %147 in 1 : vector<10x1xf32>, vector<10x127xf32> -> vector<10x128xf32>
    %149 = arith.maximumf %145, %148 : vector<10x128xf32>
    %150 = arith.maximumf %142, %149 : vector<10x128xf32>
    %151 = vector.extract_strided_slice %150 {offsets = [1, 0], sizes = [8, 128], strides = [1, 1]} : vector<10x128xf32> to vector<8x128xf32>
    %152 = vector.extract_strided_slice %150 {offsets = [0, 0], sizes = [8, 128], strides = [1, 1]} : vector<10x128xf32> to vector<8x128xf32>
    %153 = vector.extract_strided_slice %150 {offsets = [2, 0], sizes = [8, 128], strides = [1, 1]} : vector<10x128xf32> to vector<8x128xf32>
    %154 = arith.maximumf %152, %153 : vector<8x128xf32>
    %155 = arith.maximumf %151, %154 : vector<8x128xf32>
    %c0_39 = arith.constant 0 : index
    %c0_40 = arith.constant 0 : index
    %156 = vector.load %arg4[%c0_39, %c0_40] : memref<8x128xf32, #tpu.memory_space<vmem>>, vector<8x128xf32>
    tpu.vector_store %arg4[%c0_39, %c0_40], %155 {strides = array<i32>} : memref<8x128xf32, #tpu.memory_space<vmem>>, vector<8x128xf32>,
    return
  }
  func.func @transform_0(%arg0: i32) -> i32 {
    %c0_i32 = arith.constant 0 : i32
    %c0_i32_0 = arith.constant 0 : i32
    return %c0_i32 : i32
  }
  func.func @transform_1(%arg0: i32) -> (i32, i32, i32) {
    %c0_i32 = arith.constant 0 : i32
    %c0_i32_0 = arith.constant 0 : i32
    %c0_i32_1 = arith.constant 0 : i32
    return %c0_i32, %arg0, %c0_i32_0 : i32, i32, i32
  }
  func.func @transform_2(%arg0: i32) -> (i32, i32, i32, i32) {
    %c0_i32 = arith.constant 0 : i32
    %c0_i32_0 = arith.constant 0 : i32
    %c0_i32_1 = arith.constant 0 : i32
    %c0_i32_2 = arith.constant 0 : i32
    return %arg0, %c0_i32, %c0_i32_0, %c0_i32_1 : i32, i32, i32, i32
  }
  func.func @transform_3(%arg0: i32) -> (i32, i32) {
    %c0_i32 = arith.constant 0 : i32
    %c0_i32_0 = arith.constant 0 : i32
    return %arg0, %c0_i32 : i32, i32
  }
}

</mosaic_0001>

<llo_original>
// kernel: edge_detector.1
$region0: #{edge_detector.1}
  #allocation0 [shape = 'u32[]', space=smem, size = 0x4, offset = 0x4, fixed_abs, tag = 'smem constant byte address 0x4 - core index']
  #allocation1 [shape = 'u32[144,128]{1,0:T(1,128)}', space=vmem, size = 0x12000, scoped, tag = 'internal scratch']
  #allocation2 [shape = 'f32[1]{0:T(128)S(6)}', space=smem, size = 0x200, scoped, tag = 'scoped memory for edge_detector.1']
  %s0 = inlined_call_operand.<no memory space> [shape: f32[1], index: 0, kind: input, shape index: {}]
  %s1 = inlined_call_operand.vmem [shape: f32[3,32,128], index: 1, kind: input, shape index: {}]
  %s2 = inlined_call_operand.vmem [shape: f32[4,3,4,128], index: 2, kind: input, shape index: {}]
  %s3 = inlined_call_operand.vmem [shape: f32[32,128], index: 3, kind: output, shape index: {}]
  %s4 = sld [smem:[#allocation0]]
  $region83: #{edge_detector.1} parent=0
    _
  %s6 = ssub.s32 1, %s4
  %s7 = scalar_select 0, %s6, %s4
  %8 = sst [smem:[#allocation2]] %s0
  $region1: #{edge_detector.1} parent=0
    #allocation3 [shape = 'u8[24576]{0}', space=vmem, size = 0x6000, scoped, tag = 'input window, operand 1']
    loop: start=0, step=1, limit=6
    $region2: #{edge_detector.1} parent=1 // loop_pre_header
      _
    $region3: #{edge_detector.1} parent=1 // loop_header
      %s10 = sphi 0, %s14
      %p11 = scmp.ge.s32.totalorder %s10, 6
      %s18 = sphi 0, %s18
      %s20 = sphi 0, %s18
      %s21 = sphi 0, %s20
      %s35 = sphi 0, %s21
      %s41 = sphi 0, %s43
      %s44 = sphi 0, %s41
      %s45 = sphi 0, %s44
      %s61 = sphi 0, %s45
      %s67 = sphi 0, %s69
      %s70 = sphi 0, %s67
      %s71 = sphi 0, %s70
      %s87 = sphi 0, %s71
      %s93 = sphi 0, %s95
      %s96 = sphi 0, %s93
      %s97 = sphi 0, %s96
      %s113 = sphi 0, %s97
    $region4: #{edge_detector.1} parent=1 // loop_header_branch
      %13 = sbr.rel (%p11) target = $region8
    $region5: #{edge_detector.1} parent=1 // loop_body
      %s15 = ssub.s32 %s10, 1
      %s16 = ssub.s32 %s10, 2
      %s17 = sadd.s32 %s10, 1
      %s19 = sadd.s32 %s18, 1
      %p22 = scmp.eq.s32.totalorder %s10, 3
      %p23 = scmp.ne.s32.totalorder %s18, %s20
      %p24 = scmp.eq.s32.totalorder %s10, 0
      %p25 = por %p23, %p24
      %p26 = scmp.ne.s32.totalorder %s18, %s20
      %p27 = scmp.eq.s32.totalorder %s15, 3
      %p28 = por %p26, %p27
      %p29 = scmp.ne.s32.totalorder %s20, %s21
      %p30 = scmp.eq.s32.totalorder %s15, 0
      %p31 = por %p29, %p30
      %p32 = scmp.ne.s32.totalorder %s20, %s21
      %p33 = scmp.eq.s32.totalorder %s16, 3
      %p34 = por %p32, %p33
      %p36 = scmp.ne.s32.totalorder %s21, %s35
      %p37 = scmp.eq.s32.totalorder %s16, 0
      %p38 = por %p36, %p37
      %s39 = ssub.s32 %s10, %s17
      %p40 = scmp.eq.s32.totalorder %s39, 0
      %s42 = sadd.s32 %s41, 1
      %s43 = scalar_select %p40, %s41, %s42
      %p46 = pneg %p40
      %p47 = scmp.eq.s32.totalorder %s10, 3
      %p48 = por %p46, %p47
      %p49 = scmp.ne.s32.totalorder %s41, %s44
      %p50 = scmp.eq.s32.totalorder %s10, 0
      %p51 = por %p49, %p50
      %p52 = scmp.ne.s32.totalorder %s41, %s44
      %p53 = scmp.eq.s32.totalorder %s15, 3
      %p54 = por %p52, %p53
      %p55 = scmp.ne.s32.totalorder %s44, %s45
      %p56 = scmp.eq.s32.totalorder %s15, 0
      %p57 = por %p55, %p56
      %p58 = scmp.ne.s32.totalorder %s44, %s45
      %p59 = scmp.eq.s32.totalorder %s16, 3
      %p60 = por %p58, %p59
      %p62 = scmp.ne.s32.totalorder %s45, %s61
      %p63 = scmp.eq.s32.totalorder %s16, 0
      %p64 = por %p62, %p63
      %s65 = ssub.s32 %s10, %s17
      %p66 = scmp.eq.s32.totalorder %s65, 0
      %s68 = sadd.s32 %s67, 1
      %s69 = scalar_select %p66, %s67, %s68
      %p72 = pneg %p66
      %p73 = scmp.eq.s32.totalorder %s10, 3
      %p74 = por %p72, %p73
      %p75 = scmp.ne.s32.totalorder %s67, %s70
      %p76 = scmp.eq.s32.totalorder %s10, 0
      %p77 = por %p75, %p76
      %p78 = scmp.ne.s32.totalorder %s67, %s70
      %p79 = scmp.eq.s32.totalorder %s15, 3
      %p80 = por %p78, %p79
      %p81 = scmp.ne.s32.totalorder %s70, %s71
      %p82 = scmp.eq.s32.totalorder %s15, 0
      %p83 = por %p81, %p82
      %p84 = scmp.ne.s32.totalorder %s70, %s71
      %p85 = scmp.eq.s32.totalorder %s16, 3
      %p86 = por %p84, %p85
      %p88 = scmp.ne.s32.totalorder %s71, %s87
      %p89 = scmp.eq.s32.totalorder %s16, 0
      %p90 = por %p88, %p89
      %s91 = ssub.s32 %s10, %s17
      %p92 = scmp.eq.s32.totalorder %s91, 0
      %s94 = sadd.s32 %s93, 1
      %s95 = scalar_select %p92, %s93, %s94
      %p98 = pneg %p92
      %p99 = scmp.eq.s32.totalorder %s10, 3
      %p100 = por %p98, %p99
      %p101 = scmp.ne.s32.totalorder %s93, %s96
      %p102 = scmp.eq.s32.totalorder %s10, 0
      %p103 = por %p101, %p102
      %p104 = scmp.ne.s32.totalorder %s93, %s96
      %p105 = scmp.eq.s32.totalorder %s15, 3
      %p106 = por %p104, %p105
      %p107 = scmp.ne.s32.totalorder %s96, %s97
      %p108 = scmp.eq.s32.totalorder %s15, 0
      %p109 = por %p107, %p108
      %p110 = scmp.ne.s32.totalorder %s96, %s97
      %p111 = scmp.eq.s32.totalorder %s16, 3
      %p112 = por %p110, %p111
      %p114 = scmp.ne.s32.totalorder %s97, %s113
      %p115 = scmp.eq.s32.totalorder %s16, 0
      %p116 = por %p114, %p115
      %p117 = scmp.le.s32.totalorder 1, %s10
      %p118 = scmp.lt.s32.totalorder %s10, 5
      %p119 = pnand %p117, %p118
      %p120 = pneg %p119
      // Predicated region
      $region9: #{edge_detector.1} parent=5 // pred_check
        _
      $region10: #{edge_detector.1} parent=5 // pred_check_branch
        %122 = sbr.rel (%p119) target = $region12
      $region11: #{edge_detector.1} parent=5 // pred_region
        %s123 = ssub.s32 %s10, 1
        // Predicated region
        $region13: #{edge_detector.1} parent=11 // pred_check
          %p124 = pneg %p31
        $region14: #{edge_detector.1} parent=11 // pred_check_branch
          %126 = sbr.rel (%p124) target = $region16
        $region15: #{edge_detector.1} parent=11 // pred_region
          _
        $region16: #{edge_detector.1} parent=11 // pred_fallthru
          _
      $region12: #{edge_detector.1} parent=5 // pred_fallthru
        _
      %p127 = scmp.lt.s32.totalorder %s10, 4
      // Predicated region
      $region17: #{edge_detector.1} parent=5 // pred_check
        %p128 = pneg %p127
      $region18: #{edge_detector.1} parent=5 // pred_check_branch
        %130 = sbr.rel (%p128) target = $region20
      $region19: #{edge_detector.1} parent=5 // pred_region
        // Predicated region
        $region21: #{edge_detector.1} parent=19 // pred_check
          %p131 = pneg %p51
        $region22: #{edge_detector.1} parent=19 // pred_check_branch
          %133 = sbr.rel (%p131) target = $region24
        $region23: #{edge_detector.1} parent=19 // pred_region
          %s134 = sand.u32 %s41, 1
          %s135 = sand.u32 %s41, 1
          %s136 = smul.addr %s135, 24
          %s137 = scalar_lea.vmem [#allocation3], %s136
          %s138 = smul.addr %s10, 8
          %s139 = scalar_lea.vmem %s1, %s138
          // Predicated region
          $region25: #{edge_detector.1} parent=23 // pred_check
            _
          $region26: #{edge_detector.1} parent=23 // pred_check_branch
            %141 = sbr.rel (0) target = $region28
          $region27: #{edge_detector.1} parent=23 // pred_region
            // Predicated region
            $region29: #{edge_detector.1} parent=27 // pred_check
              _
            $region30: #{edge_detector.1} parent=27 // pred_check_branch
              %143 = sbr.rel (0) target = $region32
            $region31: #{edge_detector.1} parent=27 // pred_region
              // Predicated region
              $region44: #{edge_detector.1} parent=31 // pred_check
                _
              $region45: #{edge_detector.1} parent=31 // pred_check_branch
                %163 = sbr.rel (0) target = $region47
              $region46: #{edge_detector.1} parent=31 // pred_region
                loop: start=0, step=1, limit=1
                $region48: #{edge_detector.1} parent=46 // loop_pre_header
                  _
                $region49: #{edge_detector.1} parent=46 // loop_header
                  %s165 = sphi 0, %s169
                  %p166 = scmp.ge.s32.totalorder %s165, 1
                  %s170 = sphi %s139, %s139
                  %s171 = sphi %s137, %s137
                $region50: #{edge_detector.1} parent=46 // loop_header_branch
                  %168 = sbr.rel (%p166) target = $region54
                $region51: #{edge_detector.1} parent=46 // loop_body
                  %v172 = vld [vmem:[%s170] sm:$0xff]
                  %173 = vst [vmem:[%s171] sm:$0xff] %v172
                  %v174 = vld [vmem:[%s170 + $0x20] sm:$0xff]
                  %175 = vst [vmem:[%s171 + $0x8] sm:$0xff] %v174
                  %v176 = vld [vmem:[%s170 + $0x40] sm:$0xff]
                  %177 = vst [vmem:[%s171 + $0x10] sm:$0xff] %v176
                $region52: #{edge_detector.1} parent=46 // loop_footer
                  %s169 = sadd.s32 1, %s165
                $region53: #{edge_detector.1} parent=46 // loop_footer_branch
                  %164 = sbr.rel target = $region49
                $region54: #{edge_detector.1} parent=46 // loop_exit
                  _
              $region47: #{edge_detector.1} parent=31 // pred_fallthru
                _
              // Predicated region
              $region55: #{edge_detector.1} parent=31 // pred_check
                _
              $region56: #{edge_detector.1} parent=31 // pred_check_branch
                %179 = sbr.rel target = $region58
              $region57: #{edge_detector.1} parent=31 // pred_region
                _
              $region58: #{edge_detector.1} parent=31 // pred_fallthru
                _
            $region32: #{edge_detector.1} parent=27 // pred_fallthru
              _
            // Predicated region
            $region33: #{edge_detector.1} parent=27 // pred_check
              _
            $region34: #{edge_detector.1} parent=27 // pred_check_branch
              %145 = sbr.rel target = $region36
            $region35: #{edge_detector.1} parent=27 // pred_region
              %s147 = ssub.s32 256, 1
              loop: start=0, step=1, limit=1
              $region37: #{edge_detector.1} parent=35 // loop_pre_header
                _
              $region38: #{edge_detector.1} parent=35 // loop_header
                %s149 = sphi 0, %s153
                %p150 = scmp.ge.s32.totalorder %s149, 1
                %s154 = sphi %s139, %s139
                %s155 = sphi %s137, %s137
              $region39: #{edge_detector.1} parent=35 // loop_header_branch
                %152 = sbr.rel (%p150) target = $region43
              $region40: #{edge_detector.1} parent=35 // loop_body
                %v156 = vld [vmem:[%s154] sm:%s147]
                %157 = vst [vmem:[%s155] sm:%s147] %v156
                %v158 = vld [vmem:[%s154 + $0x20] sm:%s147]
                %159 = vst [vmem:[%s155 + $0x8] sm:%s147] %v158
                %v160 = vld [vmem:[%s154 + $0x40] sm:%s147]
                %161 = vst [vmem:[%s155 + $0x10] sm:%s147] %v160
              $region41: #{edge_detector.1} parent=35 // loop_footer
                %s153 = sadd.s32 1, %s149
              $region42: #{edge_detector.1} parent=35 // loop_footer_branch
                %148 = sbr.rel target = $region38
              $region43: #{edge_detector.1} parent=35 // loop_exit
                _
            $region36: #{edge_detector.1} parent=27 // pred_fallthru
              _
          $region28: #{edge_detector.1} parent=23 // pred_fallthru
            _
          %180 = vnop
        $region24: #{edge_detector.1} parent=19 // pred_fallthru
          _
        // Predicated region
        $region59: #{edge_detector.1} parent=19 // pred_check
          %p181 = pneg %p77
        $region60: #{edge_detector.1} parent=19 // pred_check_branch
          %183 = sbr.rel (%p181) target = $region62
        $region61: #{edge_detector.1} parent=19 // pred_region
          %p184 = scmp.lt.s32.totalorder %s10, 3
          %s185 = scalar_select %p184, %s10, 3
          %s186 = smul.addr %s185, 3
          %s187 = smul.addr %s186, 4
          %s188 = scalar_lea.vmem %s2, %s187
        $region62: #{edge_detector.1} parent=19 // pred_fallthru
          _
      $region20: #{edge_detector.1} parent=5 // pred_fallthru
        _
      %p189 = scmp.le.s32.totalorder 1, %s10
      %p190 = scmp.lt.s32.totalorder %s10, 5
      %p191 = pnand %p189, %p190
      %p192 = pneg %p191
      // Predicated region
      $region63: #{edge_detector.1} parent=5 // pred_check
        _
      $region64: #{edge_detector.1} parent=5 // pred_check_branch
        %194 = sbr.rel (%p191) target = $region66
      $region65: #{edge_detector.1} parent=5 // pred_region
        %s195 = ssub.s32 %s10, 1
        %s196 = sand.u32 %s44, 1
        %s197 = sand.u32 %s44, 1
        %s198 = smul.addr %s197, 24
        %s199 = scalar_lea.vmem [#allocation3], %s198
        // Predicated region
        $region67: #{edge_detector.1} parent=65 // pred_check
          %p200 = pneg %p57
        $region68: #{edge_detector.1} parent=65 // pred_check_branch
          %202 = sbr.rel (%p200) target = $region70
        $region69: #{edge_detector.1} parent=65 // pred_region
          _
        $region70: #{edge_detector.1} parent=65 // pred_fallthru
          _
        %p203 = pneg %p31
        %p204 = pneg %p28
        %s205 = sand.u32 %s44, 1
        %s206 = sand.u32 %s44, 1
        %s207 = smul.addr %s206, 24
        %s208 = scalar_lea.vmem [#allocation3], %s207
        %p209 = pneg %p57
        %p210 = pneg %p54
        %p211 = scmp.lt.s32.totalorder %s15, 3
        %s212 = scalar_select %p211, %s15, 3
        %s213 = smul.addr %s212, 3
        %s214 = smul.addr %s213, 4
        %s215 = scalar_lea.vmem %s2, %s214
        %p216 = pneg %p83
        %p217 = pneg %p80
        %p218 = pneg %p109
        %p219 = pneg %p106
        %p220 = scmp.lt.s32.totalorder %s15, 3
        %s221 = scalar_select %p220, %s15, 3
        %s222 = smul.addr %s221, 8
        %s223 = scalar_lea.vmem %s3, %s222
        %p224 = scmp.lt.s32.totalorder %s15, 3
        %s225 = scalar_select %p224, %s15, 3
        %s226 = smul.addr %s225, 3
        %s227 = smul.addr %s226, 4
        %s228 = scalar_lea.vmem %s2, %s227
        %p229 = scmp.lt.s32.totalorder %s15, 3
        %s230 = scalar_select %p229, %s15, 3
        %s231 = smul.addr %s230, 8
        %s232 = scalar_lea.vmem %s3, %s231
        %s233 = sld [smem:[#allocation2]]
        %v234 = vlaneseq
        %v235 = vand.u32 %v234, 127
        %vm236 = vcmp.eq.s32.totalorder %v235, 0
        %vm237 = vcmp.eq.s32.totalorder %v235, 31
        %v238 = vld [vmem:[%s228] sm:$0x3]
        %v239 = vld [vmem:[%s199] sm:$0xff]
        %v240 = vld [vmem:[%s228 + $0x2] sm:$0x3]
        %v242 = vrot.slane %v239, 6
        %v245 = vrot.slane %v240, 6
        %vm247 = vcmask 1041408
        %v248 = vsel %vm247, %v238, %v242
        %v249 = vsel %vm247, %v242, %v245
        %v250 = vmul.f32 %v248, 2.0
        %v251 = vmul.f32 %v249, 2.0
        %vm254 = vcmask 1046528
        %v255 = vrot.slane %v250, 1
        %v256 = vrot.slane %v251, 1
        %v257 = vsel %vm254, %v255, %v256
        %v260 = vadd.f32 %v248, %v257
        %v261 = vadd.f32 %v249, %v256
        %vm264 = vcmask 1045504
        %v265 = vrot.slane %v248, 2
        %v266 = vrot.slane %v249, 2
        %v267 = vsel %vm264, %v265, %v266
        %v270 = vadd.f32 %v260, %v267
        %v271 = vadd.f32 %v261, %v266
        %v272 = vrot.slane %v248, 6
        %v273 = vrot.slane %v249, 6
        %v274 = vsel %vm247, %v272, %v273
        %v277 = vsub.f32 %v248, %v272
        %v278 = vsub.f32 %v249, %v274
        %281 = vrot.lane.b32.xlu0 %v270, 1
        %v282 = vpop.permute.xlu0 %281
        %283 = vrot.lane.b32.xlu0 %v271, 1
        %v284 = vpop.permute.xlu0 %283
        %287 = vrot.lane.b32.xlu0 %v270, 127
        %v288 = vpop.permute.xlu0 %287
        %289 = vrot.lane.b32.xlu0 %v271, 127
        %v290 = vpop.permute.xlu0 %289
        %v293 = vsel %vm236, %v288, %v282
        %v294 = vsel %vm236, %v290, %v284
        %v295 = vsel %vm237, %v282, %v288
        %v296 = vsel %vm237, %v284, %v290
        %299 = vrot.lane.b32.xlu0 %v277, 1
        %v300 = vpop.permute.xlu0 %299
        %301 = vrot.lane.b32.xlu0 %v278, 1
        %v302 = vpop.permute.xlu0 %301
        %305 = vrot.lane.b32.xlu0 %v277, 127
        %v306 = vpop.permute.xlu0 %305
        %307 = vrot.lane.b32.xlu0 %v278, 127
        %v308 = vpop.permute.xlu0 %307
        %v311 = vsel %vm236, %v306, %v300
        %v312 = vsel %vm236, %v308, %v302
        %v313 = vsel %vm237, %v300, %v306
        %v314 = vsel %vm237, %v302, %v308
        %v315 = vsub.f32 %v295, %v293
        %v316 = vsub.f32 %v296, %v294
        %v317 = vmul.f32 %v277, 2.0
        %v318 = vmul.f32 %v278, 2.0
        %v319 = vadd.f32 %v311, %v317
        %v320 = vadd.f32 %v312, %v318
        %v321 = vadd.f32 %v319, %v313
        %v322 = vadd.f32 %v320, %v314
        %v323 = vand.u32 2147483647, %v315
        %v324 = vand.u32 2147483647, %v316
        %v325 = vand.u32 2147483647, %v321
        %v326 = vand.u32 2147483647, %v322
        %v329 = vrot.slane %v325, 2
        %v330 = vrot.slane %v326, 2
        %v331 = vsel %vm264, %v329, %v330
        %v334 = vmax.f32 %v323, %v331
        %v335 = vmax.f32 %v324, %v330
        %v336 = vadd.f32 %v334, 0.0
        %v337 = vadd.f32 %v335, 0.0
        %s338 = scalar_lea.vmem %s228, 4
        %v339 = vld [vmem:[%s338] sm:$0x3]
        %s340 = scalar_lea.vmem %s199, 8 [#allocation3]
        %v341 = vld [vmem:[%s340] sm:$0xff]
        %v342 = vld [vmem:[%s338 + $0x2] sm:$0x3]
        %v344 = vrot.slane %v341, 6
        %v347 = vrot.slane %v342, 6
        %v349 = vsel %vm247, %v339, %v344
        %v350 = vsel %vm247, %v344, %v347
        %v351 = vmul.f32 %v349, 2.0
        %v352 = vmul.f32 %v350, 2.0
        %v355 = vrot.slane %v351, 1
        %v356 = vrot.slane %v352, 1
        %v357 = vsel %vm254, %v355, %v356
        %v360 = vadd.f32 %v349, %v357
        %v361 = vadd.f32 %v350, %v356
        %v364 = vrot.slane %v349, 2
        %v365 = vrot.slane %v350, 2
        %v366 = vsel %vm264, %v364, %v365
        %v369 = vadd.f32 %v360, %v366
        %v370 = vadd.f32 %v361, %v365
        %v371 = vrot.slane %v349, 6
        %v372 = vrot.slane %v350, 6
        %v373 = vsel %vm247, %v371, %v372
        %v376 = vsub.f32 %v349, %v371
        %v377 = vsub.f32 %v350, %v373
        %380 = vrot.lane.b32.xlu0 %v369, 1
        %v381 = vpop.permute.xlu0 %380
        %382 = vrot.lane.b32.xlu0 %v370, 1
        %v383 = vpop.permute.xlu0 %382
        %386 = vrot.lane.b32.xlu0 %v369, 127
        %v387 = vpop.permute.xlu0 %386
        %388 = vrot.lane.b32.xlu0 %v370, 127
        %v389 = vpop.permute.xlu0 %388
        %v392 = vsel %vm236, %v387, %v381
        %v393 = vsel %vm236, %v389, %v383
        %v394 = vsel %vm237, %v381, %v387
        %v395 = vsel %vm237, %v383, %v389
        %398 = vrot.lane.b32.xlu0 %v376, 1
        %v399 = vpop.permute.xlu0 %398
        %400 = vrot.lane.b32.xlu0 %v377, 1
        %v401 = vpop.permute.xlu0 %400
        %404 = vrot.lane.b32.xlu0 %v376, 127
        %v405 = vpop.permute.xlu0 %404
        %406 = vrot.lane.b32.xlu0 %v377, 127
        %v407 = vpop.permute.xlu0 %406
        %v410 = vsel %vm236, %v405, %v399
        %v411 = vsel %vm236, %v407, %v401
        %v412 = vsel %vm237, %v399, %v405
        %v413 = vsel %vm237, %v401, %v407
        %v414 = vsub.f32 %v394, %v392
        %v415 = vsub.f32 %v395, %v393
        %v416 = vmul.f32 %v376, 2.0
        %v417 = vmul.f32 %v377, 2.0
        %v418 = vadd.f32 %v410, %v416
        %v419 = vadd.f32 %v411, %v417
        %v420 = vadd.f32 %v418, %v412
        %v421 = vadd.f32 %v419, %v413
        %v422 = vand.u32 2147483647, %v414
        %v423 = vand.u32 2147483647, %v415
        %v424 = vand.u32 2147483647, %v420
        %v425 = vand.u32 2147483647, %v421
        %v428 = vrot.slane %v424, 2
        %v429 = vrot.slane %v425, 2
        %v430 = vsel %vm264, %v428, %v429
        %v433 = vmax.f32 %v422, %v430
        %v434 = vmax.f32 %v423, %v429
        %v435 = vadd.f32 %v336, %v433
        %v436 = vadd.f32 %v337, %v434
        %s437 = scalar_lea.vmem %s228, 8
        %v438 = vld [vmem:[%s437] sm:$0x3]
        %s439 = scalar_lea.vmem %s199, 16 [#allocation3]
        %v440 = vld [vmem:[%s439] sm:$0xff]
        %v441 = vld [vmem:[%s437 + $0x2] sm:$0x3]
        %v443 = vrot.slane %v440, 6
        %v446 = vrot.slane %v441, 6
        %v448 = vsel %vm247, %v438, %v443
        %v449 = vsel %vm247, %v443, %v446
        %v450 = vmul.f32 %v448, 2.0
        %v451 = vmul.f32 %v449, 2.0
        %v454 = vrot.slane %v450, 1
        %v455 = vrot.slane %v451, 1
        %v456 = vsel %vm254, %v454, %v455
        %v459 = vadd.f32 %v448, %v456
        %v460 = vadd.f32 %v449, %v455
        %v463 = vrot.slane %v448, 2
        %v464 = vrot.slane %v449, 2
        %v465 = vsel %vm264, %v463, %v464
        %v468 = vadd.f32 %v459, %v465
        %v469 = vadd.f32 %v460, %v464
        %v470 = vrot.slane %v448, 6
        %v471 = vrot.slane %v449, 6
        %v472 = vsel %vm247, %v470, %v471
        %v475 = vsub.f32 %v448, %v470
        %v476 = vsub.f32 %v449, %v472
        %479 = vrot.lane.b32.xlu0 %v468, 1
        %v480 = vpop.permute.xlu0 %479
        %481 = vrot.lane.b32.xlu0 %v469, 1
        %v482 = vpop.permute.xlu0 %481
        %485 = vrot.lane.b32.xlu0 %v468, 127
        %v486 = vpop.permute.xlu0 %485
        %487 = vrot.lane.b32.xlu0 %v469, 127
        %v488 = vpop.permute.xlu0 %487
        %v491 = vsel %vm236, %v486, %v480
        %v492 = vsel %vm236, %v488, %v482
        %v493 = vsel %vm237, %v480, %v486
        %v494 = vsel %vm237, %v482, %v488
        %497 = vrot.lane.b32.xlu0 %v475, 1
        %v498 = vpop.permute.xlu0 %497
        %499 = vrot.lane.b32.xlu0 %v476, 1
        %v500 = vpop.permute.xlu0 %499
        %503 = vrot.lane.b32.xlu0 %v475, 127
        %v504 = vpop.permute.xlu0 %503
        %505 = vrot.lane.b32.xlu0 %v476, 127
        %v506 = vpop.permute.xlu0 %505
        %v509 = vsel %vm236, %v504, %v498
        %v510 = vsel %vm236, %v506, %v500
        %v511 = vsel %vm237, %v498, %v504
        %v512 = vsel %vm237, %v500, %v506
        %v513 = vsub.f32 %v493, %v491
        %v514 = vsub.f32 %v494, %v492
        %v515 = vmul.f32 %v475, 2.0
        %v516 = vmul.f32 %v476, 2.0
        %v517 = vadd.f32 %v509, %v515
        %v518 = vadd.f32 %v510, %v516
        %v519 = vadd.f32 %v517, %v511
        %v520 = vadd.f32 %v518, %v512
        %v521 = vand.u32 2147483647, %v513
        %v522 = vand.u32 2147483647, %v514
        %v523 = vand.u32 2147483647, %v519
        %v524 = vand.u32 2147483647, %v520
        %v527 = vrot.slane %v523, 2
        %v528 = vrot.slane %v524, 2
        %v529 = vsel %vm264, %v527, %v528
        %v532 = vmax.f32 %v521, %v529
        %v533 = vmax.f32 %v522, %v528
        %v534 = vadd.f32 %v435, %v532
        %v535 = vadd.f32 %v436, %v533
        %v536 = vmul.f32 %v534, 0.33333334
        %v537 = vmul.f32 %v535, 0.33333334
        %v538 = vstv %s233
        %vm539 = vcmp.gt.f32.partialorder %v536, %v538
        %vm540 = vcmp.gt.f32.partialorder %v537, %v538
        %v541 = vsel %vm539, 1, 0
        %v542 = vsel %vm540, 1, 0
        %v543 = vcvt.s32.f32 %v541
        %v544 = vcvt.s32.f32 %v542
        %vm545 = vcmp.lt.s32.totalorder %v235, 32
        %v546 = vsel %vm545, %v543, 0.0
        %v547 = vsel %vm545, %v544, 0.0
        %550 = vrot.lane.b32.xlu0 %v546, 127
        %v551 = vpop.permute.xlu0 %550
        %552 = vrot.lane.b32.xlu0 %v547, 127
        %v553 = vpop.permute.xlu0 %552
        %556 = vrot.lane.b32.xlu0 %v546, 1
        %v557 = vpop.permute.xlu0 %556
        %558 = vrot.lane.b32.xlu0 %v547, 1
        %v559 = vpop.permute.xlu0 %558
        %v562 = vmax.f32 %v551, %v557
        %v563 = vmax.f32 %v553, %v559
        %v564 = vmax.f32 %v546, %v562
        %v565 = vmax.f32 %v547, %v563
        %v568 = vrot.slane %v564, 2
        %v569 = vrot.slane %v565, 2
        %v570 = vsel %vm264, %v568, %v569
        %v572 = vmax.f32 %v564, %v570
        %v574 = vrot.slane %v572, 7
        %v576 = vmax.f32 %v564, %v574
        %v577 = vmax.f32 %v565, %v574
        %578 = vst [vmem:[%s232 - $0x1] sm:$0xfe] %v576
        %579 = vst [vmem:[%s232 + $0x7] sm:$0x1] %v577
        %p580 = scmp.lt.s32.totalorder %s15, 3
        %s581 = scalar_select %p580, %s15, 3
        %s582 = smul.addr %s581, 8
        %s583 = scalar_lea.vmem %s3, %s582
        // Predicated region
        $region71: #{edge_detector.1} parent=65 // pred_check
          %p584 = pneg %p106
        $region72: #{edge_detector.1} parent=65 // pred_check_branch
          %586 = sbr.rel (%p584) target = $region74
        $region73: #{edge_detector.1} parent=65 // pred_region
          _
        $region74: #{edge_detector.1} parent=65 // pred_fallthru
          _
      $region66: #{edge_detector.1} parent=5 // pred_fallthru
        _
      %p587 = scmp.le.s32.totalorder 2, %s10
      // Predicated region
      $region75: #{edge_detector.1} parent=5 // pred_check
        %p588 = pneg %p587
      $region76: #{edge_detector.1} parent=5 // pred_check_branch
        %590 = sbr.rel (%p588) target = $region78
      $region77: #{edge_detector.1} parent=5 // pred_region
        %s591 = ssub.s32 %s10, 2
        // Predicated region
        $region79: #{edge_detector.1} parent=77 // pred_check
          %p592 = pneg %p112
        $region80: #{edge_detector.1} parent=77 // pred_check_branch
          %594 = sbr.rel (%p592) target = $region82
        $region81: #{edge_detector.1} parent=77 // pred_region
          %p595 = scmp.lt.s32.totalorder %s16, 3
          %s596 = scalar_select %p595, %s16, 3
          %s597 = smul.addr %s596, 8
          %s598 = scalar_lea.vmem %s3, %s597
        $region82: #{edge_detector.1} parent=77 // pred_fallthru
          _
      $region78: #{edge_detector.1} parent=5 // pred_fallthru
        _
    $region6: #{edge_detector.1} parent=1 // loop_footer
      %s14 = sadd.s32 1, %s10
    $region7: #{edge_detector.1} parent=1 // loop_footer_branch
      %9 = sbr.rel target = $region3
    $region8: #{edge_detector.1} parent=1 // loop_exit
      _

</llo_original>
